<compile_context>
chip_gen: v5e
topology: v5e:2x2
jax: 0.10.0
libtpu: 0.0.40
codegen_flags: <defaults>
</compile_context>

<pallas_src>
from functools import partial

import jax
import jax.numpy as jnp
from jax.experimental import pallas as pl
from jax.experimental.pallas import tpu as pltpu

EPS = 1e-5


# ----------------------------- kernel A: conv -------------------------------
def _conv_stats_kernel(x_ref, w_ref, y_ref, stats_ref, *,
                       hout, wout, dilation, compute_dtype):
    """3x3 conv for one batch element, lane-dense output + partial BN stats.

    x_ref:     (1, Hp, Wp, Cin)      padded input (compute_dtype)
    w_ref:     (Cout, 9*Cin)         weights with the 3x3 taps folded into K
    y_ref:     (1, Cout, Hout*Wout)  conv output, spatial on the lane axis (f32)
    stats_ref: (1, Cout, 2)          per-channel [sum, sum_of_squares] partials
    """
    x = x_ref[0]                                        # (Hp, Wp, Cin)

    # Build the im2col patch using only cheap ops: 9 shifted-window slices,
    # concat along channels, then a collapse-leading reshape (no minor-dim
    # relayout of the big spatial extent).
    taps = []
    for dy in range(3):
        for dx in range(3):
            taps.append(x[dy * dilation: dy * dilation + hout,
                          dx * dilation: dx * dilation + wout, :])
    patch = jnp.concatenate(taps, axis=-1)              # (Hout, Wout, 9*Cin)
    patch = patch.reshape(hout * wout, -1)              # (HW, 9*Cin)

    # Single MXU contraction with K = 9*Cin (instead of 9 tiny K=Cin dots).
    # Contract the last dim of both operands so the result is (Cout, HW):
    # lane-dense output, f32 accumulation.  No bias add: it is cancelled by
    # the BN mean subtraction that follows.
    acc = jax.lax.dot_general(
        w_ref[...].astype(compute_dtype), patch.astype(compute_dtype),
        dimension_numbers=(((1,), (1,)), ((), ())),
        preferred_element_type=jnp.float32)             # (Cout, HW)

    y_ref[0] = acc

    # One-pass BN partial stats for this batch element (lane reduction on XLU).
    s = jnp.sum(acc, axis=1, keepdims=True)             # (Cout, 1)
    q = jnp.sum(acc * acc, axis=1, keepdims=True)       # (Cout, 1)
    stats_ref[0] = jnp.concatenate([s, q], axis=1)      # (Cout, 2)


# --------------------------- kernel B: BN + ReLU -----------------------------
def _bn_relu_kernel(y_ref, stats_ref, gb_ref, o_ref, *, inv_count):
    """BatchNorm (global batch stats) + ReLU on one lane-dense spatial tile.

    y_ref:     (1, Cout, TILE)  conv output tile (f32)
    stats_ref: (N, Cout, 2)     per-batch-element [sum, sumsq] partials
    gb_ref:    (Cout, 2)        packed [gamma, beta]
    o_ref:     (1, Cout, TILE)  normalized + ReLU'd output
    """
    tot = jnp.sum(stats_ref[...], axis=0)               # (Cout, 2) global sums
    mean = tot[:, 0:1] * inv_count                      # (Cout, 1)
    var = jnp.maximum(tot[:, 1:2] * inv_count - mean * mean, 0.0)
    gb = gb_ref[...]
    scale = gb[:, 0:1] * jax.lax.rsqrt(var + EPS)       # gamma / sqrt(var+eps)
    shift = gb[:, 1:2] - mean * scale                   # beta - mean*scale
    y = y_ref[0] * scale + shift                        # (Cout, TILE), lane bcast
    o_ref[0] = jnp.maximum(y, 0.0).astype(o_ref.dtype)


# ------------------------------- wrappers ------------------------------------
def _pick_tile(hw):
    for t in (512, 256, 128):
        if hw % t == 0:
            return t
    return hw


def conv_bn_relu(x_nhwc, w, gamma, beta, *, padding=1, dilation=1,
                 compute_dtype=jnp.float32):
    """One (Conv2d 3x3 -> BatchNorm2d(batch stats) -> ReLU) stage.

    x_nhwc: (N, H, W, Cin).  Returns (N, Cout, Hout*Wout): channel-major with
    the flattened spatial dim on the lane axis (lane-dense).
    """
    N, H, W, Cin = x_nhwc.shape
    KH, KW, _, Cout = w.shape
    Hout = H + 2 * padding - dilation * (KH - 1)
    Wout = W + 2 * padding - dilation * (KW - 1)
    HW = Hout * Wout
    K9 = KH * KW * Cin

    # Spatial zero padding is wrapper glue.  For UNet-sized images, tile over H
    # with halo'd row blocks instead of whole-image blocks (here one batch
    # element is only a few KiB of VMEM, well under any generation's budget).
    xpad = jnp.pad(
        x_nhwc, ((0, 0), (padding, padding), (padding, padding), (0, 0))
    ).astype(compute_dtype)
    Hp, Wp = H + 2 * padding, W + 2 * padding

    # (KH, KW, Cin, Cout) -> (Cout, KH*KW*Cin): taps folded into the K axis,
    # matching the patch column order (dy, dx, cin).
    w_folded = jnp.transpose(w.reshape(K9, Cout)).astype(compute_dtype)

    conv_kernel = partial(_conv_stats_kernel, hout=Hout, wout=Wout,
                          dilation=dilation, compute_dtype=compute_dtype)
    conv_out, stats = pl.pallas_call(
        conv_kernel,
        grid=(N,),
        in_specs=[
            pl.BlockSpec((1, Hp, Wp, Cin), lambda n: (n, 0, 0, 0)),
            pl.BlockSpec((Cout, K9), lambda n: (0, 0)),
        ],
        out_specs=(
            pl.BlockSpec((1, Cout, HW), lambda n: (n, 0, 0)),
            pl.BlockSpec((1, Cout, 2), lambda n: (n, 0, 0)),
        ),
        out_shape=(
            jax.ShapeDtypeStruct((N, Cout, HW), jnp.float32),
            jax.ShapeDtypeStruct((N, Cout, 2), jnp.float32),
        ),
        compiler_params=pltpu.CompilerParams(
            dimension_semantics=("parallel",)),
    )(xpad, w_folded)

    # Packed per-channel BN affine params: one small VMEM operand.
    gb = jnp.stack([gamma, beta], axis=1).astype(jnp.float32)    # (Cout, 2)

    tile = _pick_tile(HW)
    bn_kernel = partial(_bn_relu_kernel, inv_count=1.0 / float(N * HW))
    out = pl.pallas_call(
        bn_kernel,
        grid=(N, HW // tile),
        in_specs=[
            pl.BlockSpec((1, Cout, tile), lambda n, j: (n, 0, j)),
            pl.BlockSpec((N, Cout, 2), lambda n, j: (0, 0, 0)),
            pl.BlockSpec((Cout, 2), lambda n, j: (0, 0)),
        ],
        out_specs=pl.BlockSpec((1, Cout, tile), lambda n, j: (n, 0, j)),
        out_shape=jax.ShapeDtypeStruct((N, Cout, HW), jnp.float32),
        compiler_params=pltpu.CompilerParams(
            dimension_semantics=("parallel", "parallel")),
    )(conv_out, stats, gb)

    return out, Hout, Wout


def double_conv(x_nchw, params, *, padding=1, dilation=1,
                compute_dtype=jnp.float32):
    """DoubleConv forward.  Input/output are NCHW to match PyTorch.

    params carries conv biases b1/b2 for interface parity with nn.Conv2d, but
    they are unused: a per-channel constant added before training-mode
    BatchNorm is removed exactly by the mean subtraction.
    """
    N = x_nchw.shape[0]
    x = jnp.transpose(x_nchw, (0, 2, 3, 1))              # NCHW -> NHWC
    y1, H1, W1 = conv_bn_relu(x, params["w1"], params["g1"], params["be1"],
                              padding=padding, dilation=dilation,
                              compute_dtype=compute_dtype)
    Cmid = params["w1"].shape[-1]
    # Re-layout the intermediate (wrapper glue) for the second stage.
    y1_nhwc = jnp.transpose(y1.reshape(N, Cmid, H1, W1), (0, 2, 3, 1))
    y2, H2, W2 = conv_bn_relu(y1_nhwc, params["w2"], params["g2"], params["be2"],
                              padding=padding, dilation=dilation,
                              compute_dtype=compute_dtype)
    Cout = params["w2"].shape[-1]
    return y2.reshape(N, Cout, H2, W2)                   # already NCHW


# ---------------------------- pure-JAX reference ----------------------------
def _ref_stage(x, w, b, gamma, beta, padding=1, dilation=1):
    y = jax.lax.conv_general_dilated(
        x, w, window_strides=(1, 1),
        padding=[(padding, padding), (padding, padding)],
        rhs_dilation=(dilation, dilation),
        dimension_numbers=("NHWC", "HWIO", "NHWC"))
    y = y + b
    mean = jnp.mean(y, axis=(0, 1, 2), keepdims=True)
    var = jnp.mean((y - mean) ** 2, axis=(0, 1, 2), keepdims=True)
    y = (y - mean) * jax.lax.rsqrt(var + EPS) * gamma + beta
    return jnp.maximum(y, 0.0)


def double_conv_ref(x_nchw, p):
    x = jnp.transpose(x_nchw, (0, 2, 3, 1))
    y = _ref_stage(x, p["w1"], p["b1"], p["g1"], p["be1"])
    y = _ref_stage(y, p["w2"], p["b2"], p["g2"], p["be2"])
    return jnp.transpose(y, (0, 3, 1, 2))


# ---------------------------------- main ------------------------------------
if __name__ == "__main__":
    # DoubleConv(in_channels=4, out_channels=8) -> mid_channels = 8
    N, Cin, H, W = 2, 4, 16, 16
    Cmid, Cout = 8, 8

    key = jax.random.PRNGKey(0)
    k = jax.random.split(key, 9)

    x = jax.random.normal(k[0], (N, Cin, H, W), dtype=jnp.float32)

    params = {
        # conv1: Conv2d(Cin, Cmid, 3, padding=1)
        "w1": 0.1 * jax.random.normal(k[1], (3, 3, Cin, Cmid), jnp.float32),
        "b1": 0.1 * jax.random.normal(k[2], (Cmid,), jnp.float32),
        # bn1
        "g1": 1.0 + 0.1 * jax.random.normal(k[3], (Cmid,), jnp.float32),
        "be1": 0.1 * jax.random.normal(k[4], (Cmid,), jnp.float32),
        # conv2: Conv2d(Cmid, Cout, 3, padding=1)
        "w2": 0.1 * jax.random.normal(k[5], (3, 3, Cmid, Cout), jnp.float32),
        "b2": 0.1 * jax.random.normal(k[6], (Cout,), jnp.float32),
        # bn2
        "g2": 1.0 + 0.1 * jax.random.normal(k[7], (Cout,), jnp.float32),
        "be2": 0.1 * jax.random.normal(k[8], (Cout,), jnp.float32),
    }

    ref = jax.block_until_ready(double_conv_ref(x, params))

    # f32 path (default): must match the f32 reference tightly.
    out = jax.block_until_ready(double_conv(x, params))
    assert out.shape == (N, Cout, H, W), out.shape
    max_err = float(jnp.max(jnp.abs(out - ref)))
    assert max_err < 1e-3, f"f32 mismatch vs reference: {max_err}"

    # bf16 MXU path (2x MXU throughput, half the activation DMA bytes); f32
    # accumulation and f32 BN math, checked against the f32 reference with a
    # looser tolerance appropriate for bf16 inputs/weights.
    out_bf16 = jax.block_until_ready(
        double_conv(x, params, compute_dtype=jnp.bfloat16))
    max_err_bf16 = float(jnp.max(jnp.abs(out_bf16 - ref)))
    assert max_err_bf16 < 3e-2, f"bf16 mismatch vs reference: {max_err_bf16}"

    print("KERNEL_OK")
</pallas_src>

<mosaic_0001>
module attributes {stable_mosaic.version = 11 : i64} {
  func.func @_conv_stats_kernel(%arg0: i32, %arg1: memref<1x18x18x4xf32, #tpu.memory_space<vmem>>, %arg2: memref<8x36xf32, #tpu.memory_space<vmem>>, %arg3: memref<1x8x256xf32, #tpu.memory_space<vmem>>, %arg4: memref<1x8x2xf32, #tpu.memory_space<vmem>>) attributes {dimension_semantics = [#tpu.dimension_semantics<parallel>], iteration_bounds = array<i64: 2>, scalar_prefetch = 0 : i64, scratch_operands = 0 : i64, tpu.core_type = #tpu.core_type<tc>, window_params = [{transform_indices = @transform_0, window_bounds = array<i64: 1, 18, 18, 4>}, {pipeline_mode = #tpu.pipeline_mode<synchronous>, transform_indices = @transform_1, window_bounds = array<i64: 8, 36>}, {transform_indices = @transform_2, window_bounds = array<i64: 1, 8, 256>}, {transform_indices = @transform_3, window_bounds = array<i64: 1, 8, 2>}]} {
    %c0 = arith.constant 0 : index
    %c0_0 = arith.constant 0 : index
    %c0_1 = arith.constant 0 : index
    %c0_2 = arith.constant 0 : index
    %0 = vector.load %arg1[%c0, %c0_0, %c0_1, %c0_2] : memref<1x18x18x4xf32, #tpu.memory_space<vmem>>, vector<1x18x18x4xf32>
    %1 = vector.shape_cast %0 : vector<1x18x18x4xf32> to vector<18x18x4xf32>
    %2 = vector.extract_strided_slice %1 {offsets = [0, 0, 0], sizes = [16, 16, 4], strides = [1, 1, 1]} : vector<18x18x4xf32> to vector<16x16x4xf32>
    %3 = vector.extract_strided_slice %1 {offsets = [0, 1, 0], sizes = [16, 16, 4], strides = [1, 1, 1]} : vector<18x18x4xf32> to vector<16x16x4xf32>
    %4 = vector.extract_strided_slice %1 {offsets = [0, 2, 0], sizes = [16, 16, 4], strides = [1, 1, 1]} : vector<18x18x4xf32> to vector<16x16x4xf32>
    %5 = vector.extract_strided_slice %1 {offsets = [1, 0, 0], sizes = [16, 16, 4], strides = [1, 1, 1]} : vector<18x18x4xf32> to vector<16x16x4xf32>
    %6 = vector.extract_strided_slice %1 {offsets = [1, 1, 0], sizes = [16, 16, 4], strides = [1, 1, 1]} : vector<18x18x4xf32> to vector<16x16x4xf32>
    %7 = vector.extract_strided_slice %1 {offsets = [1, 2, 0], sizes = [16, 16, 4], strides = [1, 1, 1]} : vector<18x18x4xf32> to vector<16x16x4xf32>
    %8 = vector.extract_strided_slice %1 {offsets = [2, 0, 0], sizes = [16, 16, 4], strides = [1, 1, 1]} : vector<18x18x4xf32> to vector<16x16x4xf32>
    %9 = vector.extract_strided_slice %1 {offsets = [2, 1, 0], sizes = [16, 16, 4], strides = [1, 1, 1]} : vector<18x18x4xf32> to vector<16x16x4xf32>
    %10 = vector.extract_strided_slice %1 {offsets = [2, 2, 0], sizes = [16, 16, 4], strides = [1, 1, 1]} : vector<18x18x4xf32> to vector<16x16x4xf32>
    %11 = tpu.concatenate %2, %3, %4, %5, %6, %7, %8, %9, %10 in 2 : vector<16x16x4xf32>, vector<16x16x4xf32>, vector<16x16x4xf32>, vector<16x16x4xf32>, vector<16x16x4xf32>, vector<16x16x4xf32>, vector<16x16x4xf32>, vector<16x16x4xf32>, vector<16x16x4xf32> -> vector<16x16x36xf32>
    %12 = vector.shape_cast %11 : vector<16x16x36xf32> to vector<256x36xf32>
    %c0_3 = arith.constant 0 : index
    %c0_4 = arith.constant 0 : index
    %13 = vector.load %arg2[%c0_3, %c0_4] : memref<8x36xf32, #tpu.memory_space<vmem>>, vector<8x36xf32>
    %cst = arith.constant dense<0.000000e+00> : vector<8x256xf32>
    %14 = tpu.matmul %13, %12, %cst {dimension_numbers = #tpu.dot_dimension_numbers<[1], [1], [0], [0], [0, 0, 1, 0], [], []>} : vector<8x36xf32>, vector<256x36xf32>, vector<8x256xf32> -> vector<8x256xf32>
    %c0_5 = arith.constant 0 : index
    %c0_6 = arith.constant 0 : index
    %c0_7 = arith.constant 0 : index
    %15 = vector.load %arg3[%c0_5, %c0_6, %c0_7] : memref<1x8x256xf32, #tpu.memory_space<vmem>>, vector<1x8x256xf32>
    %16 = vector.shape_cast %15 : vector<1x8x256xf32> to vector<8x256xf32>
    %17 = vector.shape_cast %14 : vector<8x256xf32> to vector<1x8x256xf32>
    tpu.vector_store %arg3[%c0_5, %c0_6, %c0_7], %17 {strides = array<i32>} : memref<1x8x256xf32, #tpu.memory_space<vmem>>, vector<1x8x256xf32>,
    %cst_8 = arith.constant dense<0.000000e+00> : vector<8xf32>
    %18 = vector.multi_reduction <add>, %14, %cst_8 [1] : vector<8x256xf32> to vector<8xf32>
    %19 = vector.shape_cast %18 : vector<8xf32> to vector<8x1xf32>
    %20 = arith.mulf %14, %14 : vector<8x256xf32>
    %cst_9 = arith.constant dense<0.000000e+00> : vector<8xf32>
    %21 = vector.multi_reduction <add>, %20, %cst_9 [1] : vector<8x256xf32> to vector<8xf32>
    %22 = vector.shape_cast %21 : vector<8xf32> to vector<8x1xf32>
    %23 = tpu.concatenate %19, %22 in 1 : vector<8x1xf32>, vector<8x1xf32> -> vector<8x2xf32>
    %c0_10 = arith.constant 0 : index
    %c0_11 = arith.constant 0 : index
    %c0_12 = arith.constant 0 : index
    %24 = vector.load %arg4[%c0_10, %c0_11, %c0_12] : memref<1x8x2xf32, #tpu.memory_space<vmem>>, vector<1x8x2xf32>
    %25 = vector.shape_cast %24 : vector<1x8x2xf32> to vector<8x2xf32>
    %26 = vector.shape_cast %23 : vector<8x2xf32> to vector<1x8x2xf32>
    tpu.vector_store %arg4[%c0_10, %c0_11, %c0_12], %26 {strides = array<i32>} : memref<1x8x2xf32, #tpu.memory_space<vmem>>, vector<1x8x2xf32>,
    return
  }
  func.func @transform_0(%arg0: i32) -> (i32, i32, i32, i32) {
    %c0_i32 = arith.constant 0 : i32
    %c0_i32_0 = arith.constant 0 : i32
    %c0_i32_1 = arith.constant 0 : i32
    %c0_i32_2 = arith.constant 0 : i32
    return %arg0, %c0_i32, %c0_i32_0, %c0_i32_1 : i32, i32, i32, i32
  }
  func.func @transform_1(%arg0: i32) -> (i32, i32) {
    %c0_i32 = arith.constant 0 : i32
    %c0_i32_0 = arith.constant 0 : i32
    %c0_i32_1 = arith.constant 0 : i32
    return %c0_i32, %c0_i32_0 : i32, i32
  }
  func.func @transform_2(%arg0: i32) -> (i32, i32, i32) {
    %c0_i32 = arith.constant 0 : i32
    %c0_i32_0 = arith.constant 0 : i32
    %c0_i32_1 = arith.constant 0 : i32
    return %arg0, %c0_i32, %c0_i32_0 : i32, i32, i32
  }
  func.func @transform_3(%arg0: i32) -> (i32, i32, i32) {
    %c0_i32 = arith.constant 0 : i32
    %c0_i32_0 = arith.constant 0 : i32
    %c0_i32_1 = arith.constant 0 : i32
    return %arg0, %c0_i32, %c0_i32_0 : i32, i32, i32
  }
}

</mosaic_0001>

<llo_original>
// kernel: tpu_custom_call.1
$region0: #{tpu_custom_call.1}
  #allocation0 [shape = 'u32[]', space=smem, size = 0x4, offset = 0x4, fixed_abs, tag = 'smem constant byte address 0x4 - core index']
  #allocation1 [shape = 'u32[72,128]{1,0:T(1,128)}', space=vmem, size = 0x9000, scoped, tag = 'internal scratch']
  %s0 = inlined_call_operand.vmem [shape: f32[2,18,18,4], index: 0, kind: input, shape index: {}]
  %s1 = inlined_call_operand.vmem [shape: f32[8,36], index: 1, kind: input, shape index: {}]
  %s2 = inlined_call_operand.hbm [shape: f32[2,8,256], index: 2, kind: output, shape index: {0}]
  %s3 = inlined_call_operand.vmem [shape: f32[2,8,2], index: 3, kind: output, shape index: {1}]
  %4 = xla_tuple %s2, %s3
  %s5 = sld [smem:[#allocation0]]
  $region49: #{tpu_custom_call.1} parent=0
    _
  %s7 = ssub.s32 1, %s5
  %s8 = scalar_select 0, %s7, %s5
  $region1: #{tpu_custom_call.1} parent=0
    #allocation2 [shape = 'u8[16384]{0}', space=vmem, size = 0x4000, scoped, tag = 'output window, operand 0']
    #allocation3 [shape = 's32[2]{0}', space=sflag, size = 0x8, scoped, tag = 'scoped memory for tpu_custom_call.1']
    %9 = vsyncpa [#allocation3], 0
    %s10 = scalar_lea.sflag [#allocation3], 1
    %11 = vsyncpa %s10, 0
    loop: start=0, step=1, limit=4
    $region2: #{tpu_custom_call.1} parent=1 // loop_pre_header
      _
    $region3: #{tpu_custom_call.1} parent=1 // loop_header
      %s13 = sphi 0, %s17
      %p14 = scmp.ge.s32.totalorder %s13, 4
      %s23 = sphi 0, %s25
      %s26 = sphi 0, %s23
      %s27 = sphi 0, %s26
      %s43 = sphi 0, %s27
      %s47 = sphi 0, %s47
      %s49 = sphi 0, %s47
      %s50 = sphi 0, %s49
      %s64 = sphi 0, %s50
      %s70 = sphi 0, %s72
      %s73 = sphi 0, %s70
      %s74 = sphi 0, %s73
      %s90 = sphi 0, %s74
      %s96 = sphi 0, %s98
      %s99 = sphi 0, %s96
      %s100 = sphi 0, %s99
      %s116 = sphi 0, %s100
    $region4: #{tpu_custom_call.1} parent=1 // loop_header_branch
      %16 = sbr.rel (%p14) target = $region8
    $region5: #{tpu_custom_call.1} parent=1 // loop_body
      %s18 = ssub.s32 %s13, 1
      %s19 = ssub.s32 %s13, 2
      %s20 = sadd.s32 %s13, 1
      %s21 = ssub.s32 %s13, %s20
      %p22 = scmp.eq.s32.totalorder %s21, 0
      %s24 = sadd.s32 %s23, 1
      %s25 = scalar_select %p22, %s23, %s24
      %p28 = pneg %p22
      %p29 = scmp.eq.s32.totalorder %s13, 1
      %p30 = por %p28, %p29
      %p31 = scmp.ne.s32.totalorder %s23, %s26
      %p32 = scmp.eq.s32.totalorder %s13, 0
      %p33 = por %p31, %p32
      %p34 = scmp.ne.s32.totalorder %s23, %s26
      %p35 = scmp.eq.s32.totalorder %s18, 1
      %p36 = por %p34, %p35
      %p37 = scmp.ne.s32.totalorder %s26, %s27
      %p38 = scmp.eq.s32.totalorder %s18, 0
      %p39 = por %p37, %p38
      %p40 = scmp.ne.s32.totalorder %s26, %s27
      %p41 = scmp.eq.s32.totalorder %s19, 1
      %p42 = por %p40, %p41
      %p44 = scmp.ne.s32.totalorder %s27, %s43
      %p45 = scmp.eq.s32.totalorder %s19, 0
      %p46 = por %p44, %p45
      %s48 = sadd.s32 %s47, 1
      %p51 = scmp.eq.s32.totalorder %s13, 1
      %p52 = scmp.ne.s32.totalorder %s47, %s49
      %p53 = scmp.eq.s32.totalorder %s13, 0
      %p54 = por %p52, %p53
      %p55 = scmp.ne.s32.totalorder %s47, %s49
      %p56 = scmp.eq.s32.totalorder %s18, 1
      %p57 = por %p55, %p56
      %p58 = scmp.ne.s32.totalorder %s49, %s50
      %p59 = scmp.eq.s32.totalorder %s18, 0
      %p60 = por %p58, %p59
      %p61 = scmp.ne.s32.totalorder %s49, %s50
      %p62 = scmp.eq.s32.totalorder %s19, 1
      %p63 = por %p61, %p62
      %p65 = scmp.ne.s32.totalorder %s50, %s64
      %p66 = scmp.eq.s32.totalorder %s19, 0
      %p67 = por %p65, %p66
      %s68 = ssub.s32 %s13, %s20
      %p69 = scmp.eq.s32.totalorder %s68, 0
      %s71 = sadd.s32 %s70, 1
      %s72 = scalar_select %p69, %s70, %s71
      %p75 = pneg %p69
      %p76 = scmp.eq.s32.totalorder %s13, 1
      %p77 = por %p75, %p76
      %p78 = scmp.ne.s32.totalorder %s70, %s73
      %p79 = scmp.eq.s32.totalorder %s13, 0
      %p80 = por %p78, %p79
      %p81 = scmp.ne.s32.totalorder %s70, %s73
      %p82 = scmp.eq.s32.totalorder %s18, 1
      %p83 = por %p81, %p82
      %p84 = scmp.ne.s32.totalorder %s73, %s74
      %p85 = scmp.eq.s32.totalorder %s18, 0
      %p86 = por %p84, %p85
      %p87 = scmp.ne.s32.totalorder %s73, %s74
      %p88 = scmp.eq.s32.totalorder %s19, 1
      %p89 = por %p87, %p88
      %p91 = scmp.ne.s32.totalorder %s74, %s90
      %p92 = scmp.eq.s32.totalorder %s19, 0
      %p93 = por %p91, %p92
      %s94 = ssub.s32 %s13, %s20
      %p95 = scmp.eq.s32.totalorder %s94, 0
      %s97 = sadd.s32 %s96, 1
      %s98 = scalar_select %p95, %s96, %s97
      %p101 = pneg %p95
      %p102 = scmp.eq.s32.totalorder %s13, 1
      %p103 = por %p101, %p102
      %p104 = scmp.ne.s32.totalorder %s96, %s99
      %p105 = scmp.eq.s32.totalorder %s13, 0
      %p106 = por %p104, %p105
      %p107 = scmp.ne.s32.totalorder %s96, %s99
      %p108 = scmp.eq.s32.totalorder %s18, 1
      %p109 = por %p107, %p108
      %p110 = scmp.ne.s32.totalorder %s99, %s100
      %p111 = scmp.eq.s32.totalorder %s18, 0
      %p112 = por %p110, %p111
      %p113 = scmp.ne.s32.totalorder %s99, %s100
      %p114 = scmp.eq.s32.totalorder %s19, 1
      %p115 = por %p113, %p114
      %p117 = scmp.ne.s32.totalorder %s100, %s116
      %p118 = scmp.eq.s32.totalorder %s19, 0
      %p119 = por %p117, %p118
      %p120 = scmp.le.s32.totalorder 1, %s13
      %p121 = scmp.lt.s32.totalorder %s13, 3
      %p122 = pnand %p120, %p121
      %p123 = pneg %p122
      // Predicated region
      $region9: #{tpu_custom_call.1} parent=5 // pred_check
        _
      $region10: #{tpu_custom_call.1} parent=5 // pred_check_branch
        %125 = sbr.rel (%p122) target = $region12
      $region11: #{tpu_custom_call.1} parent=5 // pred_region
        %s126 = ssub.s32 %s13, 1
        // Predicated region
        $region13: #{tpu_custom_call.1} parent=11 // pred_check
          %p127 = pneg %p60
        $region14: #{tpu_custom_call.1} parent=11 // pred_check_branch
          %129 = sbr.rel (%p127) target = $region16
        $region15: #{tpu_custom_call.1} parent=11 // pred_region
          _
        $region16: #{tpu_custom_call.1} parent=11 // pred_fallthru
          _
      $region12: #{tpu_custom_call.1} parent=5 // pred_fallthru
        _
      %p130 = scmp.lt.s32.totalorder %s13, 2
      // Predicated region
      $region17: #{tpu_custom_call.1} parent=5 // pred_check
        %p131 = pneg %p130
      $region18: #{tpu_custom_call.1} parent=5 // pred_check_branch
        %133 = sbr.rel (%p131) target = $region20
      $region19: #{tpu_custom_call.1} parent=5 // pred_region
        // Predicated region
        $region21: #{tpu_custom_call.1} parent=19 // pred_check
          %p134 = pneg %p33
        $region22: #{tpu_custom_call.1} parent=19 // pred_check_branch
          %136 = sbr.rel (%p134) target = $region24
        $region23: #{tpu_custom_call.1} parent=19 // pred_region
          %p137 = scmp.lt.s32.totalorder %s13, 1
          %s138 = scalar_select %p137, %s13, 1
          %s139 = smul.addr %s138, 54
          %s140 = smul.addr %s139, 8
          %s141 = scalar_lea.vmem %s0, %s140
        $region24: #{tpu_custom_call.1} parent=19 // pred_fallthru
          _
      $region20: #{tpu_custom_call.1} parent=5 // pred_fallthru
        _
      %p142 = scmp.le.s32.totalorder 1, %s13
      %p143 = scmp.lt.s32.totalorder %s13, 3
      %p144 = pnand %p142, %p143
      %p145 = pneg %p144
      // Predicated region
      $region25: #{tpu_custom_call.1} parent=5 // pred_check
        _
      $region26: #{tpu_custom_call.1} parent=5 // pred_check_branch
        %147 = sbr.rel (%p144) target = $region28
      $region27: #{tpu_custom_call.1} parent=5 // pred_region
        %s148 = ssub.s32 %s13, 1
        %p149 = scmp.lt.s32.totalorder %s18, 1
        %s150 = scalar_select %p149, %s18, 1
        %s151 = smul.addr %s150, 54
        %s152 = smul.addr %s151, 8
        %s153 = scalar_lea.vmem %s0, %s152
        %p154 = pneg %p39
        %p155 = pneg %p36
        %p156 = pneg %p60
        %p157 = pneg %p57
        %p158 = pneg %p86
        %p159 = pneg %p83
        %s160 = sand.u32 %s73, 1
        %s161 = scalar_lea.sflag [#allocation3], %s160
        %s162 = sand.u32 %s73, 1
        %s163 = smul.addr %s162, 16
        %s164 = scalar_lea.vmem [#allocation2], %s163
        %p165 = pneg %p112
        %p166 = pneg %p109
        %p167 = scmp.lt.s32.totalorder %s18, 1
        %s168 = scalar_select %p167, %s18, 1
        %s169 = smul.addr %s168, 8
        %s170 = scalar_lea.vmem %s3, %s169
        %p171 = scmp.lt.s32.totalorder %s18, 1
        %s172 = scalar_select %p171, %s18, 1
        %s173 = smul.addr %s172, 54
        %s174 = smul.addr %s173, 8
        %s175 = scalar_lea.vmem %s0, %s174
        %p176 = scmp.lt.s32.totalorder %s18, 1
        %s177 = scalar_select %p176, %s18, 1
        %s178 = smul.addr %s177, 8
        %s179 = scalar_lea.vmem %s3, %s178
        %v180 = vld [vmem:[%s175] sm:$0xff]
        %v181 = vld [vmem:[%s175 + $0x8] sm:$0xff]
        %v182 = vld [vmem:[%s175 + $0x10] sm:$0x3]
        %v183 = vld [vmem:[%s175 + $0x18] sm:$0xff]
        %v184 = vld [vmem:[%s175 + $0x20] sm:$0xff]
        %v185 = vld [vmem:[%s175 + $0x28] sm:$0x3]
        %v186 = vld [vmem:[%s175 + $0x30] sm:$0xff]
        %v187 = vld [vmem:[%s175 + $0x38] sm:$0xff]
        %v188 = vld [vmem:[%s175 + $0x40] sm:$0x3]
        %v189 = vld [vmem:[%s175 + $0x48] sm:$0xff]
        %v190 = vld [vmem:[%s175 + $0x50] sm:$0xff]
        %v191 = vld [vmem:[%s175 + $0x58] sm:$0x3]
        %v192 = vld [vmem:[%s175 + $0x60] sm:$0xff]
        %v193 = vld [vmem:[%s175 + $0x68] sm:$0xff]
        %v194 = vld [vmem:[%s175 + $0x70] sm:$0x3]
        %v195 = vld [vmem:[%s175 + $0x78] sm:$0xff]
        %v196 = vld [vmem:[%s175 + $0x80] sm:$0xff]
        %v197 = vld [vmem:[%s175 + $0x88] sm:$0x3]
        %v198 = vld [vmem:[%s175 + $0x90] sm:$0xff]
        %v199 = vld [vmem:[%s175 + $0x98] sm:$0xff]
        %v200 = vld [vmem:[%s175 + $0xa0] sm:$0x3]
        %v201 = vld [vmem:[%s175 + $0xa8] sm:$0xff]
        %v202 = vld [vmem:[%s175 + $0xb0] sm:$0xff]
        %v203 = vld [vmem:[%s175 + $0xb8] sm:$0x3]
        %v204 = vld [vmem:[%s175 + $0xc0] sm:$0xff]
        %v205 = vld [vmem:[%s175 + $0xc8] sm:$0xff]
        %v206 = vld [vmem:[%s175 + $0xd0] sm:$0x3]
        %v207 = vld [vmem:[%s175 + $0xd8] sm:$0xff]
        %v208 = vld [vmem:[%s175 + $0xe0] sm:$0xff]
        %v209 = vld [vmem:[%s175 + $0xe8] sm:$0x3]
        %v210 = vld [vmem:[%s175 + $0xf0] sm:$0xff]
        %v211 = vld [vmem:[%s175 + $0xf8] sm:$0xff]
        %v212 = vld [vmem:[%s175 + $0x100] sm:$0x3]
        %v213 = vld [vmem:[%s175 + $0x108] sm:$0xff]
        %v214 = vld [vmem:[%s175 + $0x110] sm:$0xff]
        %v215 = vld [vmem:[%s175 + $0x118] sm:$0x3]
        %v216 = vld [vmem:[%s175 + $0x120] sm:$0xff]
        %v217 = vld [vmem:[%s175 + $0x128] sm:$0xff]
        %v218 = vld [vmem:[%s175 + $0x130] sm:$0x3]
        %v219 = vld [vmem:[%s175 + $0x138] sm:$0xff]
        %v220 = vld [vmem:[%s175 + $0x140] sm:$0xff]
        %v221 = vld [vmem:[%s175 + $0x148] sm:$0x3]
        %v222 = vld [vmem:[%s175 + $0x150] sm:$0xff]
        %v223 = vld [vmem:[%s175 + $0x158] sm:$0xff]
        %v224 = vld [vmem:[%s175 + $0x160] sm:$0x3]
        %v225 = vld [vmem:[%s175 + $0x168] sm:$0xff]
        %v226 = vld [vmem:[%s175 + $0x170] sm:$0xff]
        %v227 = vld [vmem:[%s175 + $0x178] sm:$0x3]
        %v228 = vld [vmem:[%s175 + $0x180] sm:$0xff]
        %v229 = vld [vmem:[%s175 + $0x188] sm:$0xff]
        %v230 = vld [vmem:[%s175 + $0x190] sm:$0x3]
        %v231 = vld [vmem:[%s175 + $0x198] sm:$0xff]
        %v232 = vld [vmem:[%s175 + $0x1a0] sm:$0xff]
        %v233 = vld [vmem:[%s175 + $0x1a8] sm:$0x3]
        %vm282 = vcmask 1046528
        %v283 = vrot.slane %v180, 1
        %v284 = vrot.slane %v181, 1
        %v285 = vsel %vm282, %v283, %v284
        %v286 = vrot.slane %v182, 1
        %v287 = vsel %vm282, %v284, %v286
        %v288 = vrot.slane %v183, 1
        %v289 = vrot.slane %v184, 1
        %v290 = vsel %vm282, %v288, %v289
        %v291 = vrot.slane %v185, 1
        %v292 = vsel %vm282, %v289, %v291
        %v293 = vrot.slane %v186, 1
        %v294 = vrot.slane %v187, 1
        %v295 = vsel %vm282, %v293, %v294
        %v296 = vrot.slane %v188, 1
        %v297 = vsel %vm282, %v294, %v296
        %v298 = vrot.slane %v189, 1
        %v299 = vrot.slane %v190, 1
        %v300 = vsel %vm282, %v298, %v299
        %v301 = vrot.slane %v191, 1
        %v302 = vsel %vm282, %v299, %v301
        %v303 = vrot.slane %v192, 1
        %v304 = vrot.slane %v193, 1
        %v305 = vsel %vm282, %v303, %v304
        %v306 = vrot.slane %v194, 1
        %v307 = vsel %vm282, %v304, %v306
        %v308 = vrot.slane %v195, 1
        %v309 = vrot.slane %v196, 1
        %v310 = vsel %vm282, %v308, %v309
        %v311 = vrot.slane %v197, 1
        %v312 = vsel %vm282, %v309, %v311
        %v313 = vrot.slane %v198, 1
        %v314 = vrot.slane %v199, 1
        %v315 = vsel %vm282, %v313, %v314
        %v316 = vrot.slane %v200, 1
        %v317 = vsel %vm282, %v314, %v316
        %v318 = vrot.slane %v201, 1
        %v319 = vrot.slane %v202, 1
        %v320 = vsel %vm282, %v318, %v319
        %v321 = vrot.slane %v203, 1
        %v322 = vsel %vm282, %v319, %v321
        %v323 = vrot.slane %v204, 1
        %v324 = vrot.slane %v205, 1
        %v325 = vsel %vm282, %v323, %v324
        %v326 = vrot.slane %v206, 1
        %v327 = vsel %vm282, %v324, %v326
        %v328 = vrot.slane %v207, 1
        %v329 = vrot.slane %v208, 1
        %v330 = vsel %vm282, %v328, %v329
        %v331 = vrot.slane %v209, 1
        %v332 = vsel %vm282, %v329, %v331
        %v333 = vrot.slane %v210, 1
        %v334 = vrot.slane %v211, 1
        %v335 = vsel %vm282, %v333, %v334
        %v336 = vrot.slane %v212, 1
        %v337 = vsel %vm282, %v334, %v336
        %v338 = vrot.slane %v213, 1
        %v339 = vrot.slane %v214, 1
        %v340 = vsel %vm282, %v338, %v339
        %v341 = vrot.slane %v215, 1
        %v342 = vsel %vm282, %v339, %v341
        %v343 = vrot.slane %v216, 1
        %v344 = vrot.slane %v217, 1
        %v345 = vsel %vm282, %v343, %v344
        %v346 = vrot.slane %v218, 1
        %v347 = vsel %vm282, %v344, %v346
        %v348 = vrot.slane %v219, 1
        %v349 = vrot.slane %v220, 1
        %v350 = vsel %vm282, %v348, %v349
        %v351 = vrot.slane %v221, 1
        %v352 = vsel %vm282, %v349, %v351
        %v353 = vrot.slane %v222, 1
        %v354 = vrot.slane %v223, 1
        %v355 = vsel %vm282, %v353, %v354
        %v356 = vrot.slane %v224, 1
        %v357 = vsel %vm282, %v354, %v356
        %v358 = vrot.slane %v225, 1
        %v359 = vrot.slane %v226, 1
        %v360 = vsel %vm282, %v358, %v359
        %v361 = vrot.slane %v227, 1
        %v362 = vsel %vm282, %v359, %v361
        %363 = vrot.lane.b32.xlu0 %v285, 4
        %v364 = vpop.permute.xlu0 %363
        %365 = vrot.lane.b32.xlu0 %v287, 4
        %v366 = vpop.permute.xlu0 %365
        %367 = vrot.lane.b32.xlu0 %v290, 4
        %v368 = vpop.permute.xlu0 %367
        %369 = vrot.lane.b32.xlu0 %v292, 4
        %v370 = vpop.permute.xlu0 %369
        %371 = vrot.lane.b32.xlu0 %v295, 4
        %v372 = vpop.permute.xlu0 %371
        %373 = vrot.lane.b32.xlu0 %v297, 4
        %v374 = vpop.permute.xlu0 %373
        %375 = vrot.lane.b32.xlu0 %v300, 4
        %v376 = vpop.permute.xlu0 %375
        %377 = vrot.lane.b32.xlu0 %v302, 4
        %v378 = vpop.permute.xlu0 %377
        %379 = vrot.lane.b32.xlu0 %v305, 4
        %v380 = vpop.permute.xlu0 %379
        %381 = vrot.lane.b32.xlu0 %v307, 4
        %v382 = vpop.permute.xlu0 %381
        %383 = vrot.lane.b32.xlu0 %v310, 4
        %v384 = vpop.permute.xlu0 %383
        %385 = vrot.lane.b32.xlu0 %v312, 4
        %v386 = vpop.permute.xlu0 %385
        %387 = vrot.lane.b32.xlu0 %v315, 4
        %v388 = vpop.permute.xlu0 %387
        %389 = vrot.lane.b32.xlu0 %v317, 4
        %v390 = vpop.permute.xlu0 %389
        %391 = vrot.lane.b32.xlu0 %v320, 4
        %v392 = vpop.permute.xlu0 %391
        %393 = vrot.lane.b32.xlu0 %v322, 4
        %v394 = vpop.permute.xlu0 %393
        %395 = vrot.lane.b32.xlu0 %v325, 4
        %v396 = vpop.permute.xlu0 %395
        %397 = vrot.lane.b32.xlu0 %v327, 4
        %v398 = vpop.permute.xlu0 %397
        %399 = vrot.lane.b32.xlu0 %v330, 4
        %v400 = vpop.permute.xlu0 %399
        %401 = vrot.lane.b32.xlu0 %v332, 4
        %v402 = vpop.permute.xlu0 %401
        %403 = vrot.lane.b32.xlu0 %v335, 4
        %v404 = vpop.permute.xlu0 %403
        %405 = vrot.lane.b32.xlu0 %v337, 4
        %v406 = vpop.permute.xlu0 %405
        %407 = vrot.lane.b32.xlu0 %v340, 4
        %v408 = vpop.permute.xlu0 %407
        %409 = vrot.lane.b32.xlu0 %v342, 4
        %v410 = vpop.permute.xlu0 %409
        %411 = vrot.lane.b32.xlu0 %v345, 4
        %v412 = vpop.permute.xlu0 %411
        %413 = vrot.lane.b32.xlu0 %v347, 4
        %v414 = vpop.permute.xlu0 %413
        %415 = vrot.lane.b32.xlu0 %v350, 4
        %v416 = vpop.permute.xlu0 %415
        %417 = vrot.lane.b32.xlu0 %v352, 4
        %v418 = vpop.permute.xlu0 %417
        %419 = vrot.lane.b32.xlu0 %v355, 4
        %v420 = vpop.permute.xlu0 %419
        %421 = vrot.lane.b32.xlu0 %v357, 4
        %v422 = vpop.permute.xlu0 %421
        %423 = vrot.lane.b32.xlu0 %v360, 4
        %v424 = vpop.permute.xlu0 %423
        %425 = vrot.lane.b32.xlu0 %v362, 4
        %v426 = vpop.permute.xlu0 %425
        %vm459 = vcmask 1045504
        %v460 = vrot.slane %v180, 2
        %v461 = vrot.slane %v181, 2
        %v462 = vsel %vm459, %v460, %v461
        %v463 = vrot.slane %v182, 2
        %v464 = vsel %vm459, %v461, %v463
        %v465 = vrot.slane %v183, 2
        %v466 = vrot.slane %v184, 2
        %v467 = vsel %vm459, %v465, %v466
        %v468 = vrot.slane %v185, 2
        %v469 = vsel %vm459, %v466, %v468
        %v470 = vrot.slane %v186, 2
        %v471 = vrot.slane %v187, 2
        %v472 = vsel %vm459, %v470, %v471
        %v473 = vrot.slane %v188, 2
        %v474 = vsel %vm459, %v471, %v473
        %v475 = vrot.slane %v189, 2
        %v476 = vrot.slane %v190, 2
        %v477 = vsel %vm459, %v475, %v476
        %v478 = vrot.slane %v191, 2
        %v479 = vsel %vm459, %v476, %v478
        %v480 = vrot.slane %v192, 2
        %v481 = vrot.slane %v193, 2
        %v482 = vsel %vm459, %v480, %v481
        %v483 = vrot.slane %v194, 2
        %v484 = vsel %vm459, %v481, %v483
        %v485 = vrot.slane %v195, 2
        %v486 = vrot.slane %v196, 2
        %v487 = vsel %vm459, %v485, %v486
        %v488 = vrot.slane %v197, 2
        %v489 = vsel %vm459, %v486, %v488
        %v490 = vrot.slane %v198, 2
        %v491 = vrot.slane %v199, 2
        %v492 = vsel %vm459, %v490, %v491
        %v493 = vrot.slane %v200, 2
        %v494 = vsel %vm459, %v491, %v493
        %v495 = vrot.slane %v201, 2
        %v496 = vrot.slane %v202, 2
        %v497 = vsel %vm459, %v495, %v496
        %v498 = vrot.slane %v203, 2
        %v499 = vsel %vm459, %v496, %v498
        %v500 = vrot.slane %v204, 2
        %v501 = vrot.slane %v205, 2
        %v502 = vsel %vm459, %v500, %v501
        %v503 = vrot.slane %v206, 2
        %v504 = vsel %vm459, %v501, %v503
        %v505 = vrot.slane %v207, 2
        %v506 = vrot.slane %v208, 2
        %v507 = vsel %vm459, %v505, %v506
        %v508 = vrot.slane %v209, 2
        %v509 = vsel %vm459, %v506, %v508
        %v510 = vrot.slane %v210, 2
        %v511 = vrot.slane %v211, 2
        %v512 = vsel %vm459, %v510, %v511
        %v513 = vrot.slane %v212, 2
        %v514 = vsel %vm459, %v511, %v513
        %v515 = vrot.slane %v213, 2
        %v516 = vrot.slane %v214, 2
        %v517 = vsel %vm459, %v515, %v516
        %v518 = vrot.slane %v215, 2
        %v519 = vsel %vm459, %v516, %v518
        %v520 = vrot.slane %v216, 2
        %v521 = vrot.slane %v217, 2
        %v522 = vsel %vm459, %v520, %v521
        %v523 = vrot.slane %v218, 2
        %v524 = vsel %vm459, %v521, %v523
        %v525 = vrot.slane %v219, 2
        %v526 = vrot.slane %v220, 2
        %v527 = vsel %vm459, %v525, %v526
        %v528 = vrot.slane %v221, 2
        %v529 = vsel %vm459, %v526, %v528
        %v530 = vrot.slane %v222, 2
        %v531 = vrot.slane %v223, 2
        %v532 = vsel %vm459, %v530, %v531
        %v533 = vrot.slane %v224, 2
        %v534 = vsel %vm459, %v531, %v533
        %v535 = vrot.slane %v225, 2
        %v536 = vrot.slane %v226, 2
        %v537 = vsel %vm459, %v535, %v536
        %v538 = vrot.slane %v227, 2
        %v539 = vsel %vm459, %v536, %v538
        %540 = vrot.lane.b32.xlu0 %v462, 8
        %v541 = vpop.permute.xlu0 %540
        %542 = vrot.lane.b32.xlu0 %v464, 8
        %v543 = vpop.permute.xlu0 %542
        %544 = vrot.lane.b32.xlu0 %v467, 8
        %v545 = vpop.permute.xlu0 %544
        %546 = vrot.lane.b32.xlu0 %v469, 8
        %v547 = vpop.permute.xlu0 %546
        %548 = vrot.lane.b32.xlu0 %v472, 8
        %v549 = vpop.permute.xlu0 %548
        %550 = vrot.lane.b32.xlu0 %v474, 8
        %v551 = vpop.permute.xlu0 %550
        %552 = vrot.lane.b32.xlu0 %v477, 8
        %v553 = vpop.permute.xlu0 %552
        %554 = vrot.lane.b32.xlu0 %v479, 8
        %v555 = vpop.permute.xlu0 %554
        %556 = vrot.lane.b32.xlu0 %v482, 8
        %v557 = vpop.permute.xlu0 %556
        %558 = vrot.lane.b32.xlu0 %v484, 8
        %v559 = vpop.permute.xlu0 %558
        %560 = vrot.lane.b32.xlu0 %v487, 8
        %v561 = vpop.permute.xlu0 %560
        %562 = vrot.lane.b32.xlu0 %v489, 8
        %v563 = vpop.permute.xlu0 %562
        %564 = vrot.lane.b32.xlu0 %v492, 8
        %v565 = vpop.permute.xlu0 %564
        %566 = vrot.lane.b32.xlu0 %v494, 8
        %v567 = vpop.permute.xlu0 %566
        %568 = vrot.lane.b32.xlu0 %v497, 8
        %v569 = vpop.permute.xlu0 %568
        %570 = vrot.lane.b32.xlu0 %v499, 8
        %v571 = vpop.permute.xlu0 %570
        %572 = vrot.lane.b32.xlu0 %v502, 8
        %v573 = vpop.permute.xlu0 %572
        %574 = vrot.lane.b32.xlu0 %v504, 8
        %v575 = vpop.permute.xlu0 %574
        %576 = vrot.lane.b32.xlu0 %v507, 8
        %v577 = vpop.permute.xlu0 %576
        %578 = vrot.lane.b32.xlu0 %v509, 8
        %v579 = vpop.permute.xlu0 %578
        %580 = vrot.lane.b32.xlu0 %v512, 8
        %v581 = vpop.permute.xlu0 %580
        %582 = vrot.lane.b32.xlu0 %v514, 8
        %v583 = vpop.permute.xlu0 %582
        %584 = vrot.lane.b32.xlu0 %v517, 8
        %v585 = vpop.permute.xlu0 %584
        %586 = vrot.lane.b32.xlu0 %v519, 8
        %v587 = vpop.permute.xlu0 %586
        %588 = vrot.lane.b32.xlu0 %v522, 8
        %v589 = vpop.permute.xlu0 %588
        %590 = vrot.lane.b32.xlu0 %v524, 8
        %v591 = vpop.permute.xlu0 %590
        %592 = vrot.lane.b32.xlu0 %v527, 8
        %v593 = vpop.permute.xlu0 %592
        %594 = vrot.lane.b32.xlu0 %v529, 8
        %v595 = vpop.permute.xlu0 %594
        %596 = vrot.lane.b32.xlu0 %v532, 8
        %v597 = vpop.permute.xlu0 %596
        %598 = vrot.lane.b32.xlu0 %v534, 8
        %v599 = vpop.permute.xlu0 %598
        %600 = vrot.lane.b32.xlu0 %v537, 8
        %v601 = vpop.permute.xlu0 %600
        %602 = vrot.lane.b32.xlu0 %v539, 8
        %v603 = vpop.permute.xlu0 %602
        %638 = vrot.lane.b32.xlu0 %v183, 12
        %v639 = vpop.permute.xlu0 %638
        %640 = vrot.lane.b32.xlu0 %v184, 12
        %v641 = vpop.permute.xlu0 %640
        %642 = vrot.lane.b32.xlu0 %v186, 12
        %v643 = vpop.permute.xlu0 %642
        %644 = vrot.lane.b32.xlu0 %v187, 12
        %v645 = vpop.permute.xlu0 %644
        %646 = vrot.lane.b32.xlu0 %v189, 12
        %v647 = vpop.permute.xlu0 %646
        %648 = vrot.lane.b32.xlu0 %v190, 12
        %v649 = vpop.permute.xlu0 %648
        %650 = vrot.lane.b32.xlu0 %v192, 12
        %v651 = vpop.permute.xlu0 %650
        %652 = vrot.lane.b32.xlu0 %v193, 12
        %v653 = vpop.permute.xlu0 %652
        %654 = vrot.lane.b32.xlu0 %v195, 12
        %v655 = vpop.permute.xlu0 %654
        %656 = vrot.lane.b32.xlu0 %v196, 12
        %v657 = vpop.permute.xlu0 %656
        %658 = vrot.lane.b32.xlu0 %v198, 12
        %v659 = vpop.permute.xlu0 %658
        %660 = vrot.lane.b32.xlu0 %v199, 12
        %v661 = vpop.permute.xlu0 %660
        %662 = vrot.lane.b32.xlu0 %v201, 12
        %v663 = vpop.permute.xlu0 %662
        %664 = vrot.lane.b32.xlu0 %v202, 12
        %v665 = vpop.permute.xlu0 %664
        %666 = vrot.lane.b32.xlu0 %v204, 12
        %v667 = vpop.permute.xlu0 %666
        %668 = vrot.lane.b32.xlu0 %v205, 12
        %v669 = vpop.permute.xlu0 %668
        %670 = vrot.lane.b32.xlu0 %v207, 12
        %v671 = vpop.permute.xlu0 %670
        %672 = vrot.lane.b32.xlu0 %v208, 12
        %v673 = vpop.permute.xlu0 %672
        %674 = vrot.lane.b32.xlu0 %v210, 12
        %v675 = vpop.permute.xlu0 %674
        %676 = vrot.lane.b32.xlu0 %v211, 12
        %v677 = vpop.permute.xlu0 %676
        %678 = vrot.lane.b32.xlu0 %v213, 12
        %v679 = vpop.permute.xlu0 %678
        %680 = vrot.lane.b32.xlu0 %v214, 12
        %v681 = vpop.permute.xlu0 %680
        %682 = vrot.lane.b32.xlu0 %v216, 12
        %v683 = vpop.permute.xlu0 %682
        %684 = vrot.lane.b32.xlu0 %v217, 12
        %v685 = vpop.permute.xlu0 %684
        %686 = vrot.lane.b32.xlu0 %v219, 12
        %v687 = vpop.permute.xlu0 %686
        %688 = vrot.lane.b32.xlu0 %v220, 12
        %v689 = vpop.permute.xlu0 %688
        %690 = vrot.lane.b32.xlu0 %v222, 12
        %v691 = vpop.permute.xlu0 %690
        %692 = vrot.lane.b32.xlu0 %v223, 12
        %v693 = vpop.permute.xlu0 %692
        %694 = vrot.lane.b32.xlu0 %v225, 12
        %v695 = vpop.permute.xlu0 %694
        %696 = vrot.lane.b32.xlu0 %v226, 12
        %v697 = vpop.permute.xlu0 %696
        %698 = vrot.lane.b32.xlu0 %v228, 12
        %v699 = vpop.permute.xlu0 %698
        %700 = vrot.lane.b32.xlu0 %v229, 12
        %v701 = vpop.permute.xlu0 %700
        %v735 = vrot.slane %v228, 1
        %v736 = vrot.slane %v229, 1
        %v737 = vsel %vm282, %v735, %v736
        %v738 = vrot.slane %v230, 1
        %v739 = vsel %vm282, %v736, %v738
        %740 = vrot.lane.b32.xlu0 %v290, 16
        %v741 = vpop.permute.xlu0 %740
        %742 = vrot.lane.b32.xlu0 %v292, 16
        %v743 = vpop.permute.xlu0 %742
        %744 = vrot.lane.b32.xlu0 %v295, 16
        %v745 = vpop.permute.xlu0 %744
        %746 = vrot.lane.b32.xlu0 %v297, 16
        %v747 = vpop.permute.xlu0 %746
        %748 = vrot.lane.b32.xlu0 %v300, 16
        %v749 = vpop.permute.xlu0 %748
        %750 = vrot.lane.b32.xlu0 %v302, 16
        %v751 = vpop.permute.xlu0 %750
        %752 = vrot.lane.b32.xlu0 %v305, 16
        %v753 = vpop.permute.xlu0 %752
        %754 = vrot.lane.b32.xlu0 %v307, 16
        %v755 = vpop.permute.xlu0 %754
        %756 = vrot.lane.b32.xlu0 %v310, 16
        %v757 = vpop.permute.xlu0 %756
        %758 = vrot.lane.b32.xlu0 %v312, 16
        %v759 = vpop.permute.xlu0 %758
        %760 = vrot.lane.b32.xlu0 %v315, 16
        %v761 = vpop.permute.xlu0 %760
        %762 = vrot.lane.b32.xlu0 %v317, 16
        %v763 = vpop.permute.xlu0 %762
        %764 = vrot.lane.b32.xlu0 %v320, 16
        %v765 = vpop.permute.xlu0 %764
        %766 = vrot.lane.b32.xlu0 %v322, 16
        %v767 = vpop.permute.xlu0 %766
        %768 = vrot.lane.b32.xlu0 %v325, 16
        %v769 = vpop.permute.xlu0 %768
        %770 = vrot.lane.b32.xlu0 %v327, 16
        %v771 = vpop.permute.xlu0 %770
        %772 = vrot.lane.b32.xlu0 %v330, 16
        %v773 = vpop.permute.xlu0 %772
        %774 = vrot.lane.b32.xlu0 %v332, 16
        %v775 = vpop.permute.xlu0 %774
        %776 = vrot.lane.b32.xlu0 %v335, 16
        %v777 = vpop.permute.xlu0 %776
        %778 = vrot.lane.b32.xlu0 %v337, 16
        %v779 = vpop.permute.xlu0 %778
        %780 = vrot.lane.b32.xlu0 %v340, 16
        %v781 = vpop.permute.xlu0 %780
        %782 = vrot.lane.b32.xlu0 %v342, 16
        %v783 = vpop.permute.xlu0 %782
        %784 = vrot.lane.b32.xlu0 %v345, 16
        %v785 = vpop.permute.xlu0 %784
        %786 = vrot.lane.b32.xlu0 %v347, 16
        %v787 = vpop.permute.xlu0 %786
        %788 = vrot.lane.b32.xlu0 %v350, 16
        %v789 = vpop.permute.xlu0 %788
        %790 = vrot.lane.b32.xlu0 %v352, 16
        %v791 = vpop.permute.xlu0 %790
        %792 = vrot.lane.b32.xlu0 %v355, 16
        %v793 = vpop.permute.xlu0 %792
        %794 = vrot.lane.b32.xlu0 %v357, 16
        %v795 = vpop.permute.xlu0 %794
        %796 = vrot.lane.b32.xlu0 %v360, 16
        %v797 = vpop.permute.xlu0 %796
        %798 = vrot.lane.b32.xlu0 %v362, 16
        %v799 = vpop.permute.xlu0 %798
        %800 = vrot.lane.b32.xlu0 %v737, 16
        %v801 = vpop.permute.xlu0 %800
        %802 = vrot.lane.b32.xlu0 %v739, 16
        %v803 = vpop.permute.xlu0 %802
        %v836 = vrot.slane %v228, 2
        %v837 = vrot.slane %v229, 2
        %v838 = vsel %vm459, %v836, %v837
        %v839 = vrot.slane %v230, 2
        %v840 = vsel %vm459, %v837, %v839
        %841 = vrot.lane.b32.xlu0 %v467, 20
        %v842 = vpop.permute.xlu0 %841
        %843 = vrot.lane.b32.xlu0 %v469, 20
        %v844 = vpop.permute.xlu0 %843
        %845 = vrot.lane.b32.xlu0 %v472, 20
        %v846 = vpop.permute.xlu0 %845
        %847 = vrot.lane.b32.xlu0 %v474, 20
        %v848 = vpop.permute.xlu0 %847
        %849 = vrot.lane.b32.xlu0 %v477, 20
        %v850 = vpop.permute.xlu0 %849
        %851 = vrot.lane.b32.xlu0 %v479, 20
        %v852 = vpop.permute.xlu0 %851
        %853 = vrot.lane.b32.xlu0 %v482, 20
        %v854 = vpop.permute.xlu0 %853
        %855 = vrot.lane.b32.xlu0 %v484, 20
        %v856 = vpop.permute.xlu0 %855
        %857 = vrot.lane.b32.xlu0 %v487, 20
        %v858 = vpop.permute.xlu0 %857
        %859 = vrot.lane.b32.xlu0 %v489, 20
        %v860 = vpop.permute.xlu0 %859
        %861 = vrot.lane.b32.xlu0 %v492, 20
        %v862 = vpop.permute.xlu0 %861
        %863 = vrot.lane.b32.xlu0 %v494, 20
        %v864 = vpop.permute.xlu0 %863
        %865 = vrot.lane.b32.xlu0 %v497, 20
        %v866 = vpop.permute.xlu0 %865
        %867 = vrot.lane.b32.xlu0 %v499, 20
        %v868 = vpop.permute.xlu0 %867
        %869 = vrot.lane.b32.xlu0 %v502, 20
        %v870 = vpop.permute.xlu0 %869
        %871 = vrot.lane.b32.xlu0 %v504, 20
        %v872 = vpop.permute.xlu0 %871
        %873 = vrot.lane.b32.xlu0 %v507, 20
        %v874 = vpop.permute.xlu0 %873
        %875 = vrot.lane.b32.xlu0 %v509, 20
        %v876 = vpop.permute.xlu0 %875
        %877 = vrot.lane.b32.xlu0 %v512, 20
        %v878 = vpop.permute.xlu0 %877
        %879 = vrot.lane.b32.xlu0 %v514, 20
        %v880 = vpop.permute.xlu0 %879
        %881 = vrot.lane.b32.xlu0 %v517, 20
        %v882 = vpop.permute.xlu0 %881
        %883 = vrot.lane.b32.xlu0 %v519, 20
        %v884 = vpop.permute.xlu0 %883
        %885 = vrot.lane.b32.xlu0 %v522, 20
        %v886 = vpop.permute.xlu0 %885
        %887 = vrot.lane.b32.xlu0 %v524, 20
        %v888 = vpop.permute.xlu0 %887
        %889 = vrot.lane.b32.xlu0 %v527, 20
        %v890 = vpop.permute.xlu0 %889
        %891 = vrot.lane.b32.xlu0 %v529, 20
        %v892 = vpop.permute.xlu0 %891
        %893 = vrot.lane.b32.xlu0 %v532, 20
        %v894 = vpop.permute.xlu0 %893
        %895 = vrot.lane.b32.xlu0 %v534, 20
        %v896 = vpop.permute.xlu0 %895
        %897 = vrot.lane.b32.xlu0 %v537, 20
        %v898 = vpop.permute.xlu0 %897
        %899 = vrot.lane.b32.xlu0 %v539, 20
        %v900 = vpop.permute.xlu0 %899
        %901 = vrot.lane.b32.xlu0 %v838, 20
        %v902 = vpop.permute.xlu0 %901
        %903 = vrot.lane.b32.xlu0 %v840, 20
        %v904 = vpop.permute.xlu0 %903
        %939 = vrot.lane.b32.xlu0 %v186, 24
        %v940 = vpop.permute.xlu0 %939
        %941 = vrot.lane.b32.xlu0 %v187, 24
        %v942 = vpop.permute.xlu0 %941
        %943 = vrot.lane.b32.xlu0 %v189, 24
        %v944 = vpop.permute.xlu0 %943
        %945 = vrot.lane.b32.xlu0 %v190, 24
        %v946 = vpop.permute.xlu0 %945
        %947 = vrot.lane.b32.xlu0 %v192, 24
        %v948 = vpop.permute.xlu0 %947
        %949 = vrot.lane.b32.xlu0 %v193, 24
        %v950 = vpop.permute.xlu0 %949
        %951 = vrot.lane.b32.xlu0 %v195, 24
        %v952 = vpop.permute.xlu0 %951
        %953 = vrot.lane.b32.xlu0 %v196, 24
        %v954 = vpop.permute.xlu0 %953
        %955 = vrot.lane.b32.xlu0 %v198, 24
        %v956 = vpop.permute.xlu0 %955
        %957 = vrot.lane.b32.xlu0 %v199, 24
        %v958 = vpop.permute.xlu0 %957
        %959 = vrot.lane.b32.xlu0 %v201, 24
        %v960 = vpop.permute.xlu0 %959
        %961 = vrot.lane.b32.xlu0 %v202, 24
        %v962 = vpop.permute.xlu0 %961
        %963 = vrot.lane.b32.xlu0 %v204, 24
        %v964 = vpop.permute.xlu0 %963
        %965 = vrot.lane.b32.xlu0 %v205, 24
        %v966 = vpop.permute.xlu0 %965
        %967 = vrot.lane.b32.xlu0 %v207, 24
        %v968 = vpop.permute.xlu0 %967
        %969 = vrot.lane.b32.xlu0 %v208, 24
        %v970 = vpop.permute.xlu0 %969
        %971 = vrot.lane.b32.xlu0 %v210, 24
        %v972 = vpop.permute.xlu0 %971
        %973 = vrot.lane.b32.xlu0 %v211, 24
        %v974 = vpop.permute.xlu0 %973
        %975 = vrot.lane.b32.xlu0 %v213, 24
        %v976 = vpop.permute.xlu0 %975
        %977 = vrot.lane.b32.xlu0 %v214, 24
        %v978 = vpop.permute.xlu0 %977
        %979 = vrot.lane.b32.xlu0 %v216, 24
        %v980 = vpop.permute.xlu0 %979
        %981 = vrot.lane.b32.xlu0 %v217, 24
        %v982 = vpop.permute.xlu0 %981
        %983 = vrot.lane.b32.xlu0 %v219, 24
        %v984 = vpop.permute.xlu0 %983
        %985 = vrot.lane.b32.xlu0 %v220, 24
        %v986 = vpop.permute.xlu0 %985
        %987 = vrot.lane.b32.xlu0 %v222, 24
        %v988 = vpop.permute.xlu0 %987
        %989 = vrot.lane.b32.xlu0 %v223, 24
        %v990 = vpop.permute.xlu0 %989
        %991 = vrot.lane.b32.xlu0 %v225, 24
        %v992 = vpop.permute.xlu0 %991
        %993 = vrot.lane.b32.xlu0 %v226, 24
        %v994 = vpop.permute.xlu0 %993
        %995 = vrot.lane.b32.xlu0 %v228, 24
        %v996 = vpop.permute.xlu0 %995
        %997 = vrot.lane.b32.xlu0 %v229, 24
        %v998 = vpop.permute.xlu0 %997
        %999 = vrot.lane.b32.xlu0 %v231, 24
        %v1000 = vpop.permute.xlu0 %999
        %1001 = vrot.lane.b32.xlu0 %v232, 24
        %v1002 = vpop.permute.xlu0 %1001
        %v1036 = vrot.slane %v231, 1
        %v1037 = vrot.slane %v232, 1
        %v1038 = vsel %vm282, %v1036, %v1037
        %v1039 = vrot.slane %v233, 1
        %v1040 = vsel %vm282, %v1037, %v1039
        %1041 = vrot.lane.b32.xlu0 %v295, 28
        %v1042 = vpop.permute.xlu0 %1041
        %1043 = vrot.lane.b32.xlu0 %v297, 28
        %v1044 = vpop.permute.xlu0 %1043
        %1045 = vrot.lane.b32.xlu0 %v300, 28
        %v1046 = vpop.permute.xlu0 %1045
        %1047 = vrot.lane.b32.xlu0 %v302, 28
        %v1048 = vpop.permute.xlu0 %1047
        %1049 = vrot.lane.b32.xlu0 %v305, 28
        %v1050 = vpop.permute.xlu0 %1049
        %1051 = vrot.lane.b32.xlu0 %v307, 28
        %v1052 = vpop.permute.xlu0 %1051
        %1053 = vrot.lane.b32.xlu0 %v310, 28
        %v1054 = vpop.permute.xlu0 %1053
        %1055 = vrot.lane.b32.xlu0 %v312, 28
        %v1056 = vpop.permute.xlu0 %1055
        %1057 = vrot.lane.b32.xlu0 %v315, 28
        %v1058 = vpop.permute.xlu0 %1057
        %1059 = vrot.lane.b32.xlu0 %v317, 28
        %v1060 = vpop.permute.xlu0 %1059
        %1061 = vrot.lane.b32.xlu0 %v320, 28
        %v1062 = vpop.permute.xlu0 %1061
        %1063 = vrot.lane.b32.xlu0 %v322, 28
        %v1064 = vpop.permute.xlu0 %1063
        %1065 = vrot.lane.b32.xlu0 %v325, 28
        %v1066 = vpop.permute.xlu0 %1065
        %1067 = vrot.lane.b32.xlu0 %v327, 28
        %v1068 = vpop.permute.xlu0 %1067
        %1069 = vrot.lane.b32.xlu0 %v330, 28
        %v1070 = vpop.permute.xlu0 %1069
        %1071 = vrot.lane.b32.xlu0 %v332, 28
        %v1072 = vpop.permute.xlu0 %1071
        %1073 = vrot.lane.b32.xlu0 %v335, 28
        %v1074 = vpop.permute.xlu0 %1073
        %1075 = vrot.lane.b32.xlu0 %v337, 28
        %v1076 = vpop.permute.xlu0 %1075
        %1077 = vrot.lane.b32.xlu0 %v340, 28
        %v1078 = vpop.permute.xlu0 %1077
        %1079 = vrot.lane.b32.xlu0 %v342, 28
        %v1080 = vpop.permute.xlu0 %1079
        %1081 = vrot.lane.b32.xlu0 %v345, 28
        %v1082 = vpop.permute.xlu0 %1081
        %1083 = vrot.lane.b32.xlu0 %v347, 28
        %v1084 = vpop.permute.xlu0 %1083
        %1085 = vrot.lane.b32.xlu0 %v350, 28
        %v1086 = vpop.permute.xlu0 %1085
        %1087 = vrot.lane.b32.xlu0 %v352, 28
        %v1088 = vpop.permute.xlu0 %1087
        %1089 = vrot.lane.b32.xlu0 %v355, 28
        %v1090 = vpop.permute.xlu0 %1089
        %1091 = vrot.lane.b32.xlu0 %v357, 28
        %v1092 = vpop.permute.xlu0 %1091
        %1093 = vrot.lane.b32.xlu0 %v360, 28
        %v1094 = vpop.permute.xlu0 %1093
        %1095 = vrot.lane.b32.xlu0 %v362, 28
        %v1096 = vpop.permute.xlu0 %1095
        %1097 = vrot.lane.b32.xlu0 %v737, 28
        %v1098 = vpop.permute.xlu0 %1097
        %1099 = vrot.lane.b32.xlu0 %v739, 28
        %v1100 = vpop.permute.xlu0 %1099
        %1101 = vrot.lane.b32.xlu0 %v1038, 28
        %v1102 = vpop.permute.xlu0 %1101
        %1103 = vrot.lane.b32.xlu0 %v1040, 28
        %v1104 = vpop.permute.xlu0 %1103
        %v1137 = vrot.slane %v231, 2
        %v1138 = vrot.slane %v232, 2
        %v1139 = vsel %vm459, %v1137, %v1138
        %v1140 = vrot.slane %v233, 2
        %v1141 = vsel %vm459, %v1138, %v1140
        %1142 = vrot.lane.b32.xlu0 %v472, 32
        %v1143 = vpop.permute.xlu0 %1142
        %1144 = vrot.lane.b32.xlu0 %v474, 32
        %v1145 = vpop.permute.xlu0 %1144
        %1146 = vrot.lane.b32.xlu0 %v477, 32
        %v1147 = vpop.permute.xlu0 %1146
        %1148 = vrot.lane.b32.xlu0 %v479, 32
        %v1149 = vpop.permute.xlu0 %1148
        %1150 = vrot.lane.b32.xlu0 %v482, 32
        %v1151 = vpop.permute.xlu0 %1150
        %1152 = vrot.lane.b32.xlu0 %v484, 32
        %v1153 = vpop.permute.xlu0 %1152
        %1154 = vrot.lane.b32.xlu0 %v487, 32
        %v1155 = vpop.permute.xlu0 %1154
        %1156 = vrot.lane.b32.xlu0 %v489, 32
        %v1157 = vpop.permute.xlu0 %1156
        %1158 = vrot.lane.b32.xlu0 %v492, 32
        %v1159 = vpop.permute.xlu0 %1158
        %1160 = vrot.lane.b32.xlu0 %v494, 32
        %v1161 = vpop.permute.xlu0 %1160
        %1162 = vrot.lane.b32.xlu0 %v497, 32
        %v1163 = vpop.permute.xlu0 %1162
        %1164 = vrot.lane.b32.xlu0 %v499, 32
        %v1165 = vpop.permute.xlu0 %1164
        %1166 = vrot.lane.b32.xlu0 %v502, 32
        %v1167 = vpop.permute.xlu0 %1166
        %1168 = vrot.lane.b32.xlu0 %v504, 32
        %v1169 = vpop.permute.xlu0 %1168
        %1170 = vrot.lane.b32.xlu0 %v507, 32
        %v1171 = vpop.permute.xlu0 %1170
        %1172 = vrot.lane.b32.xlu0 %v509, 32
        %v1173 = vpop.permute.xlu0 %1172
        %1174 = vrot.lane.b32.xlu0 %v512, 32
        %v1175 = vpop.permute.xlu0 %1174
        %1176 = vrot.lane.b32.xlu0 %v514, 32
        %v1177 = vpop.permute.xlu0 %1176
        %1178 = vrot.lane.b32.xlu0 %v517, 32
        %v1179 = vpop.permute.xlu0 %1178
        %1180 = vrot.lane.b32.xlu0 %v519, 32
        %v1181 = vpop.permute.xlu0 %1180
        %1182 = vrot.lane.b32.xlu0 %v522, 32
        %v1183 = vpop.permute.xlu0 %1182
        %1184 = vrot.lane.b32.xlu0 %v524, 32
        %v1185 = vpop.permute.xlu0 %1184
        %1186 = vrot.lane.b32.xlu0 %v527, 32
        %v1187 = vpop.permute.xlu0 %1186
        %1188 = vrot.lane.b32.xlu0 %v529, 32
        %v1189 = vpop.permute.xlu0 %1188
        %1190 = vrot.lane.b32.xlu0 %v532, 32
        %v1191 = vpop.permute.xlu0 %1190
        %1192 = vrot.lane.b32.xlu0 %v534, 32
        %v1193 = vpop.permute.xlu0 %1192
        %1194 = vrot.lane.b32.xlu0 %v537, 32
        %v1195 = vpop.permute.xlu0 %1194
        %1196 = vrot.lane.b32.xlu0 %v539, 32
        %v1197 = vpop.permute.xlu0 %1196
        %1198 = vrot.lane.b32.xlu0 %v838, 32
        %v1199 = vpop.permute.xlu0 %1198
        %1200 = vrot.lane.b32.xlu0 %v840, 32
        %v1201 = vpop.permute.xlu0 %1200
        %1202 = vrot.lane.b32.xlu0 %v1139, 32
        %v1203 = vpop.permute.xlu0 %1202
        %1204 = vrot.lane.b32.xlu0 %v1141, 32
        %v1205 = vpop.permute.xlu0 %1204
        %vm1238 = vcmask 31744
        %v1239 = vsel %vm1238, %v180, %v364
        %v1240 = vsel %vm1238, %v181, %v366
        %v1241 = vsel %vm1238, %v183, %v368
        %v1242 = vsel %vm1238, %v184, %v370
        %v1243 = vsel %vm1238, %v186, %v372
        %v1244 = vsel %vm1238, %v187, %v374
        %v1245 = vsel %vm1238, %v189, %v376
        %v1246 = vsel %vm1238, %v190, %v378
        %v1247 = vsel %vm1238, %v192, %v380
        %v1248 = vsel %vm1238, %v193, %v382
        %v1249 = vsel %vm1238, %v195, %v384
        %v1250 = vsel %vm1238, %v196, %v386
        %v1251 = vsel %vm1238, %v198, %v388
        %v1252 = vsel %vm1238, %v199, %v390
        %v1253 = vsel %vm1238, %v201, %v392
        %v1254 = vsel %vm1238, %v202, %v394
        %v1255 = vsel %vm1238, %v204, %v396
        %v1256 = vsel %vm1238, %v205, %v398
        %v1257 = vsel %vm1238, %v207, %v400
        %v1258 = vsel %vm1238, %v208, %v402
        %v1259 = vsel %vm1238, %v210, %v404
        %v1260 = vsel %vm1238, %v211, %v406
        %v1261 = vsel %vm1238, %v213, %v408
        %v1262 = vsel %vm1238, %v214, %v410
        %v1263 = vsel %vm1238, %v216, %v412
        %v1264 = vsel %vm1238, %v217, %v414
        %v1265 = vsel %vm1238, %v219, %v416
        %v1266 = vsel %vm1238, %v220, %v418
        %v1267 = vsel %vm1238, %v222, %v420
        %v1268 = vsel %vm1238, %v223, %v422
        %v1269 = vsel %vm1238, %v225, %v424
        %v1270 = vsel %vm1238, %v226, %v426
        %vm1271 = vcmask 64512
        %v1272 = vsel %vm1271, %v1239, %v541
        %v1273 = vsel %vm1271, %v1240, %v543
        %v1274 = vsel %vm1271, %v1241, %v545
        %v1275 = vsel %vm1271, %v1242, %v547
        %v1276 = vsel %vm1271, %v1243, %v549
        %v1277 = vsel %vm1271, %v1244, %v551
        %v1278 = vsel %vm1271, %v1245, %v553
        %v1279 = vsel %vm1271, %v1246, %v555
        %v1280 = vsel %vm1271, %v1247, %v557
        %v1281 = vsel %vm1271, %v1248, %v559
        %v1282 = vsel %vm1271, %v1249, %v561
        %v1283 = vsel %vm1271, %v1250, %v563
        %v1284 = vsel %vm1271, %v1251, %v565
        %v1285 = vsel %vm1271, %v1252, %v567
        %v1286 = vsel %vm1271, %v1253, %v569
        %v1287 = vsel %vm1271, %v1254, %v571
        %v1288 = vsel %vm1271, %v1255, %v573
        %v1289 = vsel %vm1271, %v1256, %v575
        %v1290 = vsel %vm1271, %v1257, %v577
        %v1291 = vsel %vm1271, %v1258, %v579
        %v1292 = vsel %vm1271, %v1259, %v581
        %v1293 = vsel %vm1271, %v1260, %v583
        %v1294 = vsel %vm1271, %v1261, %v585
        %v1295 = vsel %vm1271, %v1262, %v587
        %v1296 = vsel %vm1271, %v1263, %v589
        %v1297 = vsel %vm1271, %v1264, %v591
        %v1298 = vsel %vm1271, %v1265, %v593
        %v1299 = vsel %vm1271, %v1266, %v595
        %v1300 = vsel %vm1271, %v1267, %v597
        %v1301 = vsel %vm1271, %v1268, %v599
        %v1302 = vsel %vm1271, %v1269, %v601
        %v1303 = vsel %vm1271, %v1270, %v603
        %vm1304 = vcmask 97280
        %v1305 = vsel %vm1304, %v1272, %v639
        %v1306 = vsel %vm1304, %v1273, %v641
        %v1307 = vsel %vm1304, %v1274, %v643
        %v1308 = vsel %vm1304, %v1275, %v645
        %v1309 = vsel %vm1304, %v1276, %v647
        %v1310 = vsel %vm1304, %v1277, %v649
        %v1311 = vsel %vm1304, %v1278, %v651
        %v1312 = vsel %vm1304, %v1279, %v653
        %v1313 = vsel %vm1304, %v1280, %v655
        %v1314 = vsel %vm1304, %v1281, %v657
        %v1315 = vsel %vm1304, %v1282, %v659
        %v1316 = vsel %vm1304, %v1283, %v661
        %v1317 = vsel %vm1304, %v1284, %v663
        %v1318 = vsel %vm1304, %v1285, %v665
        %v1319 = vsel %vm1304, %v1286, %v667
        %v1320 = vsel %vm1304, %v1287, %v669
        %v1321 = vsel %vm1304, %v1288, %v671
        %v1322 = vsel %vm1304, %v1289, %v673
        %v1323 = vsel %vm1304, %v1290, %v675
        %v1324 = vsel %vm1304, %v1291, %v677
        %v1325 = vsel %vm1304, %v1292, %v679
        %v1326 = vsel %vm1304, %v1293, %v681
        %v1327 = vsel %vm1304, %v1294, %v683
        %v1328 = vsel %vm1304, %v1295, %v685
        %v1329 = vsel %vm1304, %v1296, %v687
        %v1330 = vsel %vm1304, %v1297, %v689
        %v1331 = vsel %vm1304, %v1298, %v691
        %v1332 = vsel %vm1304, %v1299, %v693
        %v1333 = vsel %vm1304, %v1300, %v695
        %v1334 = vsel %vm1304, %v1301, %v697
        %v1335 = vsel %vm1304, %v1302, %v699
        %v1336 = vsel %vm1304, %v1303, %v701
        %vm1337 = vcmask 130048
        %v1338 = vsel %vm1337, %v1305, %v741
        %v1339 = vsel %vm1337, %v1306, %v743
        %v1340 = vsel %vm1337, %v1307, %v745
        %v1341 = vsel %vm1337, %v1308, %v747
        %v1342 = vsel %vm1337, %v1309, %v749
        %v1343 = vsel %vm1337, %v1310, %v751
        %v1344 = vsel %vm1337, %v1311, %v753
        %v1345 = vsel %vm1337, %v1312, %v755
        %v1346 = vsel %vm1337, %v1313, %v757
        %v1347 = vsel %vm1337, %v1314, %v759
        %v1348 = vsel %vm1337, %v1315, %v761
        %v1349 = vsel %vm1337, %v1316, %v763
        %v1350 = vsel %vm1337, %v1317, %v765
        %v1351 = vsel %vm1337, %v1318, %v767
        %v1352 = vsel %vm1337, %v1319, %v769
        %v1353 = vsel %vm1337, %v1320, %v771
        %v1354 = vsel %vm1337, %v1321, %v773
        %v1355 = vsel %vm1337, %v1322, %v775
        %v1356 = vsel %vm1337, %v1323, %v777
        %v1357 = vsel %vm1337, %v1324, %v779
        %v1358 = vsel %vm1337, %v1325, %v781
        %v1359 = vsel %vm1337, %v1326, %v783
        %v1360 = vsel %vm1337, %v1327, %v785
        %v1361 = vsel %vm1337, %v1328, %v787
        %v1362 = vsel %vm1337, %v1329, %v789
        %v1363 = vsel %vm1337, %v1330, %v791
        %v1364 = vsel %vm1337, %v1331, %v793
        %v1365 = vsel %vm1337, %v1332, %v795
        %v1366 = vsel %vm1337, %v1333, %v797
        %v1367 = vsel %vm1337, %v1334, %v799
        %v1368 = vsel %vm1337, %v1335, %v801
        %v1369 = vsel %vm1337, %v1336, %v803
        %vm1370 = vcmask 162816
        %v1371 = vsel %vm1370, %v1338, %v842
        %v1372 = vsel %vm1370, %v1339, %v844
        %v1373 = vsel %vm1370, %v1340, %v846
        %v1374 = vsel %vm1370, %v1341, %v848
        %v1375 = vsel %vm1370, %v1342, %v850
        %v1376 = vsel %vm1370, %v1343, %v852
        %v1377 = vsel %vm1370, %v1344, %v854
        %v1378 = vsel %vm1370, %v1345, %v856
        %v1379 = vsel %vm1370, %v1346, %v858
        %v1380 = vsel %vm1370, %v1347, %v860
        %v1381 = vsel %vm1370, %v1348, %v862
        %v1382 = vsel %vm1370, %v1349, %v864
        %v1383 = vsel %vm1370, %v1350, %v866
        %v1384 = vsel %vm1370, %v1351, %v868
        %v1385 = vsel %vm1370, %v1352, %v870
        %v1386 = vsel %vm1370, %v1353, %v872
        %v1387 = vsel %vm1370, %v1354, %v874
        %v1388 = vsel %vm1370, %v1355, %v876
        %v1389 = vsel %vm1370, %v1356, %v878
        %v1390 = vsel %vm1370, %v1357, %v880
        %v1391 = vsel %vm1370, %v1358, %v882
        %v1392 = vsel %vm1370, %v1359, %v884
        %v1393 = vsel %vm1370, %v1360, %v886
        %v1394 = vsel %vm1370, %v1361, %v888
        %v1395 = vsel %vm1370, %v1362, %v890
        %v1396 = vsel %vm1370, %v1363, %v892
        %v1397 = vsel %vm1370, %v1364, %v894
        %v1398 = vsel %vm1370, %v1365, %v896
        %v1399 = vsel %vm1370, %v1366, %v898
        %v1400 = vsel %vm1370, %v1367, %v900
        %v1401 = vsel %vm1370, %v1368, %v902
        %v1402 = vsel %vm1370, %v1369, %v904
        %vm1403 = vcmask 195584
        %v1404 = vsel %vm1403, %v1371, %v940
        %v1405 = vsel %vm1403, %v1372, %v942
        %v1406 = vsel %vm1403, %v1373, %v944
        %v1407 = vsel %vm1403, %v1374, %v946
        %v1408 = vsel %vm1403, %v1375, %v948
        %v1409 = vsel %vm1403, %v1376, %v950
        %v1410 = vsel %vm1403, %v1377, %v952
        %v1411 = vsel %vm1403, %v1378, %v954
        %v1412 = vsel %vm1403, %v1379, %v956
        %v1413 = vsel %vm1403, %v1380, %v958
        %v1414 = vsel %vm1403, %v1381, %v960
        %v1415 = vsel %vm1403, %v1382, %v962
        %v1416 = vsel %vm1403, %v1383, %v964
        %v1417 = vsel %vm1403, %v1384, %v966
        %v1418 = vsel %vm1403, %v1385, %v968
        %v1419 = vsel %vm1403, %v1386, %v970
        %v1420 = vsel %vm1403, %v1387, %v972
        %v1421 = vsel %vm1403, %v1388, %v974
        %v1422 = vsel %vm1403, %v1389, %v976
        %v1423 = vsel %vm1403, %v1390, %v978
        %v1424 = vsel %vm1403, %v1391, %v980
        %v1425 = vsel %vm1403, %v1392, %v982
        %v1426 = vsel %vm1403, %v1393, %v984
        %v1427 = vsel %vm1403, %v1394, %v986
        %v1428 = vsel %vm1403, %v1395, %v988
        %v1429 = vsel %vm1403, %v1396, %v990
        %v1430 = vsel %vm1403, %v1397, %v992
        %v1431 = vsel %vm1403, %v1398, %v994
        %v1432 = vsel %vm1403, %v1399, %v996
        %v1433 = vsel %vm1403, %v1400, %v998
        %v1434 = vsel %vm1403, %v1401, %v1000
        %v1435 = vsel %vm1403, %v1402, %v1002
        %vm1436 = vcmask 228352
        %v1437 = vsel %vm1436, %v1404, %v1042
        %v1438 = vsel %vm1436, %v1405, %v1044
        %v1439 = vsel %vm1436, %v1406, %v1046
        %v1440 = vsel %vm1436, %v1407, %v1048
        %v1441 = vsel %vm1436, %v1408, %v1050
        %v1442 = vsel %vm1436, %v1409, %v1052
        %v1443 = vsel %vm1436, %v1410, %v1054
        %v1444 = vsel %vm1436, %v1411, %v1056
        %v1445 = vsel %vm1436, %v1412, %v1058
        %v1446 = vsel %vm1436, %v1413, %v1060
        %v1447 = vsel %vm1436, %v1414, %v1062
        %v1448 = vsel %vm1436, %v1415, %v1064
        %v1449 = vsel %vm1436, %v1416, %v1066
        %v1450 = vsel %vm1436, %v1417, %v1068
        %v1451 = vsel %vm1436, %v1418, %v1070
        %v1452 = vsel %vm1436, %v1419, %v1072
        %v1453 = vsel %vm1436, %v1420, %v1074
        %v1454 = vsel %vm1436, %v1421, %v1076
        %v1455 = vsel %vm1436, %v1422, %v1078
        %v1456 = vsel %vm1436, %v1423, %v1080
        %v1457 = vsel %vm1436, %v1424, %v1082
        %v1458 = vsel %vm1436, %v1425, %v1084
        %v1459 = vsel %vm1436, %v1426, %v1086
        %v1460 = vsel %vm1436, %v1427, %v1088
        %v1461 = vsel %vm1436, %v1428, %v1090
        %v1462 = vsel %vm1436, %v1429, %v1092
        %v1463 = vsel %vm1436, %v1430, %v1094
        %v1464 = vsel %vm1436, %v1431, %v1096
        %v1465 = vsel %vm1436, %v1432, %v1098
        %v1466 = vsel %vm1436, %v1433, %v1100
        %v1467 = vsel %vm1436, %v1434, %v1102
        %v1468 = vsel %vm1436, %v1435, %v1104
        %vm1469 = vcmask 261120
        %v1470 = vsel %vm1469, %v1437, %v1143
        %v1471 = vsel %vm1469, %v1438, %v1145
        %v1472 = vsel %vm1469, %v1439, %v1147
        %v1473 = vsel %vm1469, %v1440, %v1149
        %v1474 = vsel %vm1469, %v1441, %v1151
        %v1475 = vsel %vm1469, %v1442, %v1153
        %v1476 = vsel %vm1469, %v1443, %v1155
        %v1477 = vsel %vm1469, %v1444, %v1157
        %v1478 = vsel %vm1469, %v1445, %v1159
        %v1479 = vsel %vm1469, %v1446, %v1161
        %v1480 = vsel %vm1469, %v1447, %v1163
        %v1481 = vsel %vm1469, %v1448, %v1165
        %v1482 = vsel %vm1469, %v1449, %v1167
        %v1483 = vsel %vm1469, %v1450, %v1169
        %v1484 = vsel %vm1469, %v1451, %v1171
        %v1485 = vsel %vm1469, %v1452, %v1173
        %v1486 = vsel %vm1469, %v1453, %v1175
        %v1487 = vsel %vm1469, %v1454, %v1177
        %v1488 = vsel %vm1469, %v1455, %v1179
        %v1489 = vsel %vm1469, %v1456, %v1181
        %v1490 = vsel %vm1469, %v1457, %v1183
        %v1491 = vsel %vm1469, %v1458, %v1185
        %v1492 = vsel %vm1469, %v1459, %v1187
        %v1493 = vsel %vm1469, %v1460, %v1189
        %v1494 = vsel %vm1469, %v1461, %v1191
        %v1495 = vsel %vm1469, %v1462, %v1193
        %v1496 = vsel %vm1469, %v1463, %v1195
        %v1497 = vsel %vm1469, %v1464, %v1197
        %v1498 = vsel %vm1469, %v1465, %v1199
        %v1499 = vsel %vm1469, %v1466, %v1201
        %v1500 = vsel %vm1469, %v1467, %v1203
        %v1501 = vsel %vm1469, %v1468, %v1205
        %v1502 = vld [vmem:[%s1] sm:$0xff]
        %vm1503 = vcmask 293888
        %v1505 = vsel %vm1503, %v1502, 0
        %v1508 = vsel %vm1503, %v1470, 0
        %v1511 = vsel %vm1503, %v1471, 0
        %v1514 = vsel %vm1503, %v1472, 0
        %v1517 = vsel %vm1503, %v1473, 0
        %v1520 = vsel %vm1503, %v1474, 0
        %v1523 = vsel %vm1503, %v1475, 0
        %v1526 = vsel %vm1503, %v1476, 0
        %v1529 = vsel %vm1503, %v1477, 0
        %v1532 = vsel %vm1503, %v1478, 0
        %v1535 = vsel %vm1503, %v1479, 0
        %v1538 = vsel %vm1503, %v1480, 0
        %v1541 = vsel %vm1503, %v1481, 0
        %v1544 = vsel %vm1503, %v1482, 0
        %v1547 = vsel %vm1503, %v1483, 0
        %v1550 = vsel %vm1503, %v1484, 0
        %v1553 = vsel %vm1503, %v1485, 0
        %v1556 = vsel %vm1503, %v1486, 0
        %v1559 = vsel %vm1503, %v1487, 0
        %v1562 = vsel %vm1503, %v1488, 0
        %v1565 = vsel %vm1503, %v1489, 0
        %v1568 = vsel %vm1503, %v1490, 0
        %v1571 = vsel %vm1503, %v1491, 0
        %v1574 = vsel %vm1503, %v1492, 0
        %v1577 = vsel %vm1503, %v1493, 0
        %v1580 = vsel %vm1503, %v1494, 0
        %v1583 = vsel %vm1503, %v1495, 0
        %v1586 = vsel %vm1503, %v1496, 0
        %v1589 = vsel %vm1503, %v1497, 0
        %v1592 = vsel %vm1503, %v1498, 0
        %v1595 = vsel %vm1503, %v1499, 0
        %v1598 = vsel %vm1503, %v1500, 0
        %v1601 = vsel %vm1503, %v1501, 0
        %1603 = vmatpush.xpose.msra.mxu0 %v1553
        %1604 = vmatpush.xpose.msra.mxu0 %v1550
        %1605 = vmatpush.xpose.msra.mxu0 %v1547
        %1606 = vmatpush.xpose.msra.mxu0 %v1544
        %1607 = vmatpush.xpose.msra.mxu0 %v1541
        %1608 = vmatpush.xpose.msra.mxu0 %v1538
        %1609 = vmatpush.xpose.msra.mxu0 %v1535
        %1610 = vmatpush.xpose.msra.mxu0 %v1532
        %1611 = vmatpush.xpose.msra.mxu0 %v1529
        %1612 = vmatpush.xpose.msra.mxu0 %v1526
        %1613 = vmatpush.xpose.msra.mxu0 %v1523
        %1614 = vmatpush.xpose.msra.mxu0 %v1520
        %1615 = vmatpush.xpose.msra.mxu0 %v1517
        %1616 = vmatpush.xpose.msra.mxu0 %v1514
        %1617 = vmatpush.xpose.msra.mxu0 %v1511
        %1618 = vmatpush.xpose.msra.mxu0 %v1508
        %1619 = vmatmul.f32.gmra.mxu0 %v1505
        %v1620 = vpop.f32.mrf.mxu0
        %v1621 = vadd.f32 0.0, %v1620
        %1622 = vdwg.mxu0
        %1623 = vmatpush.xpose.msra.mxu0 %v1601
        %1624 = vmatpush.xpose.msra.mxu0 %v1598
        %1625 = vmatpush.xpose.msra.mxu0 %v1595
        %1626 = vmatpush.xpose.msra.mxu0 %v1592
        %1627 = vmatpush.xpose.msra.mxu0 %v1589
        %1628 = vmatpush.xpose.msra.mxu0 %v1586
        %1629 = vmatpush.xpose.msra.mxu0 %v1583
        %1630 = vmatpush.xpose.msra.mxu0 %v1580
        %1631 = vmatpush.xpose.msra.mxu0 %v1577
        %1632 = vmatpush.xpose.msra.mxu0 %v1574
        %1633 = vmatpush.xpose.msra.mxu0 %v1571
        %1634 = vmatpush.xpose.msra.mxu0 %v1568
        %1635 = vmatpush.xpose.msra.mxu0 %v1565
        %1636 = vmatpush.xpose.msra.mxu0 %v1562
        %1637 = vmatpush.xpose.msra.mxu0 %v1559
        %1638 = vmatpush.xpose.msra.mxu0 %v1556
        %1639 = vmatmul.f32.gmra.mxu0 %v1505
        %v1640 = vpop.f32.mrf.mxu0
        %v1641 = vadd.f32 0.0, %v1640
        %1642 = vdwg.mxu0
        %1643 = vst [vmem:[%s164] sm:$0xff] %v1621
        %1644 = vst [vmem:[%s164 + $0x8] sm:$0xff] %v1641
        %v1645 = vadd.f32 %v1621, %v1641
        %1646 = vadd.xlane.f32.xlu0 %v1645
        %v1647 = vpop.xlane.xlu0 %1646
        %v1648 = vmul.f32 %v1621, %v1621
        %v1649 = vmul.f32 %v1641, %v1641
        %v1650 = vadd.f32 %v1648, %v1649
        %1651 = vadd.xlane.f32.xlu0 %v1650
        %v1652 = vpop.xlane.xlu0 %1651
        %vm1653 = vcmask 7168
        %v1654 = vsel %vm1653, %v1647, %v1652
        %vm1655 = vcmask 15360
        %1656 = vst.msk [vmem:[%s179] sm:$0xff] %vm1655, %v1654
        %s1657 = sand.u32 %s73, 1
        %s1658 = scalar_lea.sflag [#allocation3], %s1657
        %s1659 = sand.u32 %s73, 1
        %s1660 = smul.addr %s1659, 16
        %s1661 = scalar_lea.vmem [#allocation2], %s1660
        %p1662 = scmp.lt.s32.totalorder %s18, 1
        %s1663 = scalar_select %p1662, %s18, 1
        %s1664 = smul.addr %s1663, 8
        %s1665 = scalar_lea.vmem %s3, %s1664
        // Predicated region
        $region29: #{tpu_custom_call.1} parent=27 // pred_check
          %p1666 = pneg %p83
        $region30: #{tpu_custom_call.1} parent=27 // pred_check_branch
          %1668 = sbr.rel (%p1666) target = $region32
        $region31: #{tpu_custom_call.1} parent=27 // pred_region
          %1670 = vsyncadd %s1658, 0
          %s1671 = smul.addr %s18, 2
          %s1672 = smul.addr %s1671, 8
          %s1673 = scalar_lea.hbm %s2, %s1672
          %s1675 = sshll.u32 %s1661, 4
          %s1676 = int_to_ptr.vmem [resolvable:$true] %s1675
          %s1677 = sshll.u32 %s1673, 4
          %s1678 = int_to_ptr.hbm [resolvable:$true] %s1677
          %1680 = dma.vmem_to_hbm [thread:$0]  %s1676, 256, %s1678, %s1658
        $region32: #{tpu_custom_call.1} parent=27 // pred_fallthru
          _
        // Predicated region
        $region33: #{tpu_custom_call.1} parent=27 // pred_check
          %p1681 = pneg %p109
        $region34: #{tpu_custom_call.1} parent=27 // pred_check_branch
          %1683 = sbr.rel (%p1681) target = $region36
        $region35: #{tpu_custom_call.1} parent=27 // pred_region
          _
        $region36: #{tpu_custom_call.1} parent=27 // pred_fallthru
          _
      $region28: #{tpu_custom_call.1} parent=5 // pred_fallthru
        _
      %p1684 = scmp.le.s32.totalorder 2, %s13
      // Predicated region
      $region37: #{tpu_custom_call.1} parent=5 // pred_check
        %p1685 = pneg %p1684
      $region38: #{tpu_custom_call.1} parent=5 // pred_check_branch
        %1687 = sbr.rel (%p1685) target = $region40
      $region39: #{tpu_custom_call.1} parent=5 // pred_region
        %s1688 = ssub.s32 %s13, 2
        // Predicated region
        $region41: #{tpu_custom_call.1} parent=39 // pred_check
          %p1689 = pneg %p89
        $region42: #{tpu_custom_call.1} parent=39 // pred_check_branch
          %1691 = sbr.rel (%p1689) target = $region44
        $region43: #{tpu_custom_call.1} parent=39 // pred_region
          %s1692 = sand.u32 %s74, 1
          %s1693 = scalar_lea.sflag [#allocation3], %s1692
          %s1694 = sand.u32 %s74, 1
          %s1695 = smul.addr %s1694, 16
          %s1696 = scalar_lea.vmem [#allocation2], %s1695
          %1698 = dma.done %s1693, 256
        $region44: #{tpu_custom_call.1} parent=39 // pred_fallthru
          _
        // Predicated region
        $region45: #{tpu_custom_call.1} parent=39 // pred_check
          %p1699 = pneg %p115
        $region46: #{tpu_custom_call.1} parent=39 // pred_check_branch
          %1701 = sbr.rel (%p1699) target = $region48
        $region47: #{tpu_custom_call.1} parent=39 // pred_region
          %p1702 = scmp.lt.s32.totalorder %s19, 1
          %s1703 = scalar_select %p1702, %s19, 1
          %s1704 = smul.addr %s1703, 8
          %s1705 = scalar_lea.vmem %s3, %s1704
        $region48: #{tpu_custom_call.1} parent=39 // pred_fallthru
          _
      $region40: #{tpu_custom_call.1} parent=5 // pred_fallthru
        _
    $region6: #{tpu_custom_call.1} parent=1 // loop_footer
      %s17 = sadd.s32 1, %s13
    $region7: #{tpu_custom_call.1} parent=1 // loop_footer_branch
      %12 = sbr.rel target = $region3
    $region8: #{tpu_custom_call.1} parent=1 // loop_exit
      _
    %1706 = vsyncpa [#allocation3], 1
    %s1707 = scalar_lea.sflag [#allocation3], 1
    %1708 = vsyncpa %s1707, 1

</llo_original>
